<compile_context>
chip_gen: v5e
topology: v5e:2x2
jax: 0.10.0
libtpu: 0.0.40
codegen_flags: <defaults>
</compile_context>

<pallas_src>
import functools

import jax
import jax.numpy as jnp
from jax.experimental import pallas as pl
from jax.experimental.pallas import tpu as pltpu

BN_EPS = 1e-5
LANE = 128
SUB = 8


def _round_up(n, m):
    return (n + m - 1) // m * m


def _vmem_limit_bytes():
    """Generation-aware scoped-VMEM limit (v5e/v6e: 128 MiB phys, v7x: 64)."""
    cap = 64 << 20
    try:
        info = pltpu.get_tpu_info()
        for name in ("vmem_capacity_bytes", "vmem_size_bytes", "vmem_bytes"):
            v = getattr(info, name, None)
            if v:
                cap = int(v)
                break
    except Exception:
        pass
    return (100 << 20) if cap >= (120 << 20) else (48 << 20)


# ---------------------------------------------------------------------------
# Fused single-tile kernel: Linear->ReLU->Linear->ReLU->BN(stats+apply)->Linear
# Used when the whole (padded) batch fits in one tile: h never leaves VMEM.
# ---------------------------------------------------------------------------
def fused_mlp_kernel(x_ref, w1_ref, w2_ref, gamma_ref, beta_ref, wl_ref,
                     o_ref, *, inv_b, eps):
    h = jnp.dot(x_ref[...], w1_ref[...], preferred_element_type=jnp.float32)
    h = jnp.maximum(h, 0.0)
    h = jnp.dot(h.astype(jnp.bfloat16), w2_ref[...],
                preferred_element_type=jnp.float32)
    h = jnp.maximum(h, 0.0)
    # Full-batch (train-mode, biased) BatchNorm statistics. Padded rows are
    # zero and contribute nothing; inv_b is 1/true_batch.
    mean = jnp.sum(h, axis=0, keepdims=True) * inv_b
    var = jnp.maximum(
        jnp.sum(h * h, axis=0, keepdims=True) * inv_b - mean * mean, 0.0)
    scale = gamma_ref[...] * jax.lax.rsqrt(var + eps)          # EUP rsqrt
    shift = beta_ref[...] - mean * scale
    h = h * scale + shift                                      # one FMA/elem
    o_ref[...] = jnp.dot(h.astype(jnp.bfloat16), wl_ref[...],
                         preferred_element_type=jnp.float32)


# ---------------------------------------------------------------------------
# Pass 1 (tiled batch, "parallel"): hidden stack + per-tile BN partial sums.
# h is written back to HBM in bf16; the partial sums stay f32 and are
# replicated across the 8-row output block (wrapper reads row 0 per tile).
# ---------------------------------------------------------------------------
def hidden_stats_kernel(x_ref, w1_ref, w2_ref, h_ref, s1_ref, s2_ref):
    h = jnp.dot(x_ref[...], w1_ref[...], preferred_element_type=jnp.float32)
    h = jnp.maximum(h, 0.0)
    h = jnp.dot(h.astype(jnp.bfloat16), w2_ref[...],
                preferred_element_type=jnp.float32)
    h = jnp.maximum(h, 0.0)
    h_ref[...] = h.astype(jnp.bfloat16)          # bf16 writeback: half traffic
    s1 = jnp.sum(h, axis=0, keepdims=True)       # per-tile sum   (f32)
    s2 = jnp.sum(h * h, axis=0, keepdims=True)   # per-tile sumsq (f32)
    s1_ref[...] = jnp.broadcast_to(s1, s1_ref.shape)
    s2_ref[...] = jnp.broadcast_to(s2, s2_ref.shape)


# ---------------------------------------------------------------------------
# Pass 2 (tiled batch, "parallel"): hoisted BN scale/shift FMA + last Linear.
# ---------------------------------------------------------------------------
def bn_last_kernel(scale_ref, shift_ref, h_ref, wl_ref, o_ref):
    h = h_ref[...].astype(jnp.float32) * scale_ref[...] + shift_ref[...]
    o_ref[...] = jnp.dot(h.astype(jnp.bfloat16), wl_ref[...],
                         preferred_element_type=jnp.float32)


def prepare_params(w1, w2, gamma, beta, w_last):
    """One-time host-side prep: transpose to [in,out], zero-pad every feature
    dim to a multiple of 128, cast weights to bf16.  Cache and reuse."""
    d1, d0 = w1.shape
    d2 = w2.shape[0]
    d3 = w_last.shape[0]
    d0p, d1p, d2p, d3p = (_round_up(d, LANE) for d in (d0, d1, d2, d3))
    w1t = jnp.zeros((d0p, d1p), jnp.bfloat16).at[:d0, :d1].set(
        w1.T.astype(jnp.bfloat16))
    w2t = jnp.zeros((d1p, d2p), jnp.bfloat16).at[:d1, :d2].set(
        w2.T.astype(jnp.bfloat16))
    wlt = jnp.zeros((d2p, d3p), jnp.bfloat16).at[:d2, :d3].set(
        w_last.T.astype(jnp.bfloat16))
    g_p = jnp.zeros((1, d2p), jnp.float32).at[:, :d2].set(
        jnp.reshape(gamma, (1, d2)).astype(jnp.float32))
    b_p = jnp.zeros((1, d2p), jnp.float32).at[:, :d2].set(
        jnp.reshape(beta, (1, d2)).astype(jnp.float32))
    return dict(w1t=w1t, w2t=w2t, wlt=wlt, gamma=g_p, beta=b_p,
                dims=(d0, d1, d2, d3), pdims=(d0p, d1p, d2p, d3p))


def _pick_batch_tile(B, pdims, vmem_limit, batch_tile_cap):
    d0p, d1p, d2p, d3p = pdims
    # Resident (single-buffered) bf16 weights.
    resident = (d0p * d1p + d1p * d2p + d2p * d3p) * 2
    # Per-batch-row VMEM in flight: double-buffered bf16 x & h tiles, f32
    # matmul intermediates, double-buffered f32 output tile.
    per_row = 2 * 2 * d0p + 2 * 2 * d2p + 4 * (d1p + d2p) + 2 * 4 * d3p
    budget = int(vmem_limit * 0.75) - resident
    tb = batch_tile_cap
    while tb > SUB and tb * per_row > budget:
        tb //= 2
    return max(SUB, min(_round_up(tb, SUB), _round_up(B, SUB)))


def mlp_forward(x, params, *, bn_eps=BN_EPS, batch_tile=512):
    """Forward of MLP([d0,d1,d2,d3], bn=True, linear_bias=False), train mode.
    `params` comes from prepare_params() (hoisted weight prep)."""
    d0, d1, d2, d3 = params["dims"]
    d0p, d1p, d2p, d3p = params["pdims"]
    w1t, w2t, wlt = params["w1t"], params["w2t"], params["wlt"]
    g_p, b_p = params["gamma"], params["beta"]

    B = x.shape[0]
    x2d = x.reshape(B, -1)
    assert x2d.shape[1] == d0

    vmem_limit = _vmem_limit_bytes()
    tb = _pick_batch_tile(B, params["pdims"], vmem_limit, batch_tile)
    bp = _round_up(B, tb)
    n_bt = bp // tb

    # bf16 input, lane/sublane padded; skip the pad copy when already aligned.
    if bp == B and d0p == d0:
        xp = x2d.astype(jnp.bfloat16)
    else:
        xp = jnp.zeros((bp, d0p), jnp.bfloat16).at[:B, :d0].set(
            x2d.astype(jnp.bfloat16))

    cparams = functools.partial(pltpu.CompilerParams,
                                vmem_limit_bytes=vmem_limit)

    if n_bt == 1:
        # Whole batch in one tile: fully fused kernel, h stays in VMEM.
        full = lambda s: pl.BlockSpec(s, lambda i: (0,) * len(s))
        out = pl.pallas_call(
            functools.partial(fused_mlp_kernel, inv_b=1.0 / B, eps=bn_eps),
            out_shape=jax.ShapeDtypeStruct((bp, d3p), jnp.float32),
            grid=(1,),
            in_specs=[full((bp, d0p)), full((d0p, d1p)), full((d1p, d2p)),
                      full((1, d2p)), full((1, d2p)), full((d2p, d3p))],
            out_specs=full((bp, d3p)),
            compiler_params=cparams(dimension_semantics=("arbitrary",)),
        )(xp, w1t, w2t, g_p, b_p, wlt)
        return out[:B, :d3]

    def run_two_pass(single_buffer):
        if single_buffer:
            # Grid-invariant blocks fetched once -> single-buffer them
            # (halves their VMEM footprint; matters on v7x's 64 MiB).
            const = lambda s: pl.BlockSpec(s, lambda i: (0,) * len(s),
                                           pipeline_mode=pl.Buffered(1))
        else:
            const = lambda s: pl.BlockSpec(s, lambda i: (0,) * len(s))
        row_tiled = lambda w: pl.BlockSpec((tb, w), lambda i: (i, 0))

        # Pass 1: hidden features (bf16) + per-tile BN partial sums.
        # "parallel": each tile writes its own s1/s2 block, so both v7x
        # TensorCores can work on the compute-heavy pass.
        h, s1, s2 = pl.pallas_call(
            hidden_stats_kernel,
            out_shape=(jax.ShapeDtypeStruct((bp, d2p), jnp.bfloat16),
                       jax.ShapeDtypeStruct((n_bt * SUB, d2p), jnp.float32),
                       jax.ShapeDtypeStruct((n_bt * SUB, d2p), jnp.float32)),
            grid=(n_bt,),
            in_specs=[row_tiled(d0p), const((d0p, d1p)), const((d1p, d2p))],
            out_specs=(row_tiled(d2p),
                       pl.BlockSpec((SUB, d2p), lambda i: (i, 0)),
                       pl.BlockSpec((SUB, d2p), lambda i: (i, 0))),
            compiler_params=cparams(dimension_semantics=("parallel",)),
        )(xp, w1t, w2t)

        # Tiny hoisted reduction + BN scale/shift (computed once, not per
        # batch tile). Padded rows are zero and the divisor is the true B.
        mean = jnp.sum(s1[::SUB], axis=0, keepdims=True) / B
        ex2 = jnp.sum(s2[::SUB], axis=0, keepdims=True) / B
        var = jnp.maximum(ex2 - mean * mean, 0.0)
        # TODO(synk): switch to a centered / Welford accumulation if
        # E[h^2]-mean^2 cancellation ever matters at production scales.
        scale = g_p * jax.lax.rsqrt(var + bn_eps)
        shift = b_p - mean * scale

        # Pass 2: BN FMA + last Linear, batch-parallel.
        return pl.pallas_call(
            bn_last_kernel,
            out_shape=jax.ShapeDtypeStruct((bp, d3p), jnp.float32),
            grid=(n_bt,),
            in_specs=[const((1, d2p)), const((1, d2p)),
                      row_tiled(d2p), const((d2p, d3p))],
            out_specs=row_tiled(d3p),
            compiler_params=cparams(dimension_semantics=("parallel",)),
        )(scale, shift, h, wlt)

    try:
        out = run_two_pass(single_buffer=True)
    except Exception:
        # pl.Buffered(1) unsupported on this jax/libtpu: fall back to the
        # default double-buffered constant blocks (correctness identical).
        out = run_two_pass(single_buffer=False)
    return out[:B, :d3]


def init_params(key, layer_widths):
    """Deterministic init mirroring the torch module's parameter shapes."""
    d0, d1, d2, d3 = layer_widths
    k1, k2, k3 = jax.random.split(key, 3)
    # PyTorch-style [out, in] weights, bias=False everywhere.
    w1 = jax.random.normal(k1, (d1, d0), jnp.float32) * (1.0 / jnp.sqrt(d0))
    w2 = jax.random.normal(k2, (d2, d1), jnp.float32) * (1.0 / jnp.sqrt(d1))
    w_last = jax.random.normal(k3, (d3, d2), jnp.float32) * (1.0 / jnp.sqrt(d2))
    # BatchNorm1d affine params (default init: gamma=1, beta=0).
    gamma = jnp.ones((d2,), jnp.float32)
    beta = jnp.zeros((d2,), jnp.float32)
    return w1, w2, gamma, beta, w_last


def reference_forward(x, w1, w2, gamma, beta, w_last, bn_eps=BN_EPS):
    """Pure-JAX reference with torch-module semantics (train-mode BN),
    using bf16 matmul operands to match the kernel's precision choices."""
    B = x.shape[0]
    bf = jnp.bfloat16
    h = x.reshape(B, -1).astype(jnp.float32)
    h = jnp.maximum(jnp.dot(h.astype(bf), w1.T.astype(bf),
                            preferred_element_type=jnp.float32), 0.0)
    h = jnp.maximum(jnp.dot(h.astype(bf), w2.T.astype(bf),
                            preferred_element_type=jnp.float32), 0.0)
    mean = jnp.mean(h, axis=0, keepdims=True)
    var = jnp.mean((h - mean) ** 2, axis=0, keepdims=True)
    h = (h - mean) / jnp.sqrt(var + bn_eps) * gamma.reshape(1, -1) \
        + beta.reshape(1, -1)
    return jnp.dot(h.astype(bf), w_last.T.astype(bf),
                   preferred_element_type=jnp.float32)


if __name__ == "__main__":
    # layer_widths: input flattened to 64 features, two hidden Linear+ReLU
    # layers of width 32, BatchNorm1d(32), final Linear to 16.
    layer_widths = [64, 32, 32, 16]
    key = jax.random.PRNGKey(0)
    kx, kx2, kp = jax.random.split(key, 3)

    w1, w2, gamma, beta, w_last = init_params(kp, layer_widths)
    params = prepare_params(w1, w2, gamma, beta, w_last)   # hoisted, cached

    # Small batch (8, 4, 4, 4) -> flattens to 64 -> fused single-tile path.
    x_small = jax.random.normal(kx, (8, 4, 4, 4), jnp.float32)
    out_small = jax.block_until_ready(mlp_forward(x_small, params))
    ref_small = reference_forward(x_small, w1, w2, gamma, beta, w_last)
    assert out_small.shape == (8, 16)
    assert jnp.allclose(out_small, ref_small, atol=2e-3, rtol=2e-3), \
        float(jnp.max(jnp.abs(out_small - ref_small)))

    # Larger batch -> two-pass tiled path (parallel stats, bf16 h round trip).
    x_big = jax.random.normal(kx2, (1024, 4, 4, 4), jnp.float32)
    out_big = jax.block_until_ready(mlp_forward(x_big, params))
    ref_big = reference_forward(x_big, w1, w2, gamma, beta, w_last)
    assert out_big.shape == (1024, 16)
    # bf16 storage of h between the passes costs ~2^-9 relative on h, so the
    # comparison against the pure-f32-BN reference uses a looser tolerance.
    assert jnp.allclose(out_big, ref_big, atol=2e-2, rtol=2e-2), \
        float(jnp.max(jnp.abs(out_big - ref_big)))

    print("KERNEL_OK")
</pallas_src>

<mosaic_0001>
module attributes {stable_mosaic.version = 11 : i64} {
  func.func @fused_mlp_kernel(%arg0: i32, %arg1: memref<8x128xbf16, #tpu.memory_space<vmem>>, %arg2: memref<128x128xbf16, #tpu.memory_space<vmem>>, %arg3: memref<128x128xbf16, #tpu.memory_space<vmem>>, %arg4: memref<1x128xf32, #tpu.memory_space<vmem>>, %arg5: memref<1x128xf32, #tpu.memory_space<vmem>>, %arg6: memref<128x128xbf16, #tpu.memory_space<vmem>>, %arg7: memref<8x128xf32, #tpu.memory_space<vmem>>) attributes {dimension_semantics = [#tpu.dimension_semantics<arbitrary>], iteration_bounds = array<i64: 1>, scalar_prefetch = 0 : i64, scratch_operands = 0 : i64, tpu.core_type = #tpu.core_type<tc>, window_params = [{pipeline_mode = #tpu.pipeline_mode<synchronous>, transform_indices = @transform_0, window_bounds = array<i64: 8, 128>}, {pipeline_mode = #tpu.pipeline_mode<synchronous>, transform_indices = @transform_1, window_bounds = array<i64: 128, 128>}, {pipeline_mode = #tpu.pipeline_mode<synchronous>, transform_indices = @transform_2, window_bounds = array<i64: 128, 128>}, {pipeline_mode = #tpu.pipeline_mode<synchronous>, transform_indices = @transform_3, window_bounds = array<i64: 1, 128>}, {pipeline_mode = #tpu.pipeline_mode<synchronous>, transform_indices = @transform_4, window_bounds = array<i64: 1, 128>}, {pipeline_mode = #tpu.pipeline_mode<synchronous>, transform_indices = @transform_5, window_bounds = array<i64: 128, 128>}, {pipeline_mode = #tpu.pipeline_mode<synchronous>, transform_indices = @transform_6, window_bounds = array<i64: 8, 128>}]} {
    %c0 = arith.constant 0 : index
    %c0_0 = arith.constant 0 : index
    %0 = vector.load %arg1[%c0, %c0_0] : memref<8x128xbf16, #tpu.memory_space<vmem>>, vector<8x128xbf16>
    %c0_1 = arith.constant 0 : index
    %c0_2 = arith.constant 0 : index
    %1 = vector.load %arg2[%c0_1, %c0_2] : memref<128x128xbf16, #tpu.memory_space<vmem>>, vector<128x128xbf16>
    %cst = arith.constant dense<0.000000e+00> : vector<8x128xf32>
    %2 = tpu.matmul %0, %1, %cst {dimension_numbers = #tpu.dot_dimension_numbers<[1], [0], [0], [1], [0, 0, 1, 1], [], []>} : vector<8x128xbf16>, vector<128x128xbf16>, vector<8x128xf32> -> vector<8x128xf32>
    %cst_3 = arith.constant 0.000000e+00 : f32
    %3 = vector.broadcast %cst_3 : f32 to vector<8x128xf32>
    %4 = arith.maximumf %2, %3 : vector<8x128xf32>
    %5 = arith.truncf %4 : vector<8x128xf32> to vector<8x128xbf16>
    %c0_4 = arith.constant 0 : index
    %c0_5 = arith.constant 0 : index
    %6 = vector.load %arg3[%c0_4, %c0_5] : memref<128x128xbf16, #tpu.memory_space<vmem>>, vector<128x128xbf16>
    %cst_6 = arith.constant dense<0.000000e+00> : vector<8x128xf32>
    %7 = tpu.matmul %5, %6, %cst_6 {dimension_numbers = #tpu.dot_dimension_numbers<[1], [0], [0], [1], [0, 0, 1, 1], [], []>} : vector<8x128xbf16>, vector<128x128xbf16>, vector<8x128xf32> -> vector<8x128xf32>
    %cst_7 = arith.constant 0.000000e+00 : f32
    %8 = vector.broadcast %cst_7 : f32 to vector<8x128xf32>
    %9 = arith.maximumf %7, %8 : vector<8x128xf32>
    %cst_8 = arith.constant dense<0.000000e+00> : vector<128xf32>
    %10 = vector.multi_reduction <add>, %9, %cst_8 [0] : vector<8x128xf32> to vector<128xf32>
    %11 = vector.shape_cast %10 : vector<128xf32> to vector<1x128xf32>
    %cst_9 = arith.constant 1.250000e-01 : f32
    %12 = vector.broadcast %cst_9 : f32 to vector<1x128xf32>
    %13 = arith.mulf %11, %12 : vector<1x128xf32>
    %14 = arith.mulf %9, %9 : vector<8x128xf32>
    %cst_10 = arith.constant dense<0.000000e+00> : vector<128xf32>
    %15 = vector.multi_reduction <add>, %14, %cst_10 [0] : vector<8x128xf32> to vector<128xf32>
    %16 = vector.shape_cast %15 : vector<128xf32> to vector<1x128xf32>
    %cst_11 = arith.constant 1.250000e-01 : f32
    %17 = vector.broadcast %cst_11 : f32 to vector<1x128xf32>
    %18 = arith.mulf %16, %17 : vector<1x128xf32>
    %19 = arith.mulf %13, %13 : vector<1x128xf32>
    %20 = arith.subf %18, %19 : vector<1x128xf32>
    %cst_12 = arith.constant 0.000000e+00 : f32
    %21 = vector.broadcast %cst_12 : f32 to vector<1x128xf32>
    %22 = arith.maximumf %20, %21 : vector<1x128xf32>
    %c0_13 = arith.constant 0 : index
    %c0_14 = arith.constant 0 : index
    %23 = vector.load %arg4[%c0_13, %c0_14] : memref<1x128xf32, #tpu.memory_space<vmem>>, vector<1x128xf32>
    %cst_15 = arith.constant 9.99999974E-6 : f32
    %24 = vector.broadcast %cst_15 : f32 to vector<1x128xf32>
    %25 = arith.addf %22, %24 : vector<1x128xf32>
    %26 = math.rsqrt %25 : vector<1x128xf32>
    %27 = arith.mulf %23, %26 : vector<1x128xf32>
    %c0_16 = arith.constant 0 : index
    %c0_17 = arith.constant 0 : index
    %28 = vector.load %arg5[%c0_16, %c0_17] : memref<1x128xf32, #tpu.memory_space<vmem>>, vector<1x128xf32>
    %29 = arith.mulf %13, %27 : vector<1x128xf32>
    %30 = arith.subf %28, %29 : vector<1x128xf32>
    %31 = vector.broadcast %27 : vector<1x128xf32> to vector<8x128xf32>
    %32 = arith.mulf %9, %31 : vector<8x128xf32>
    %33 = vector.broadcast %30 : vector<1x128xf32> to vector<8x128xf32>
    %34 = arith.addf %32, %33 : vector<8x128xf32>
    %35 = arith.truncf %34 : vector<8x128xf32> to vector<8x128xbf16>
    %c0_18 = arith.constant 0 : index
    %c0_19 = arith.constant 0 : index
    %36 = vector.load %arg6[%c0_18, %c0_19] : memref<128x128xbf16, #tpu.memory_space<vmem>>, vector<128x128xbf16>
    %cst_20 = arith.constant dense<0.000000e+00> : vector<8x128xf32>
    %37 = tpu.matmul %35, %36, %cst_20 {dimension_numbers = #tpu.dot_dimension_numbers<[1], [0], [0], [1], [0, 0, 1, 1], [], []>} : vector<8x128xbf16>, vector<128x128xbf16>, vector<8x128xf32> -> vector<8x128xf32>
    %c0_21 = arith.constant 0 : index
    %c0_22 = arith.constant 0 : index
    %38 = vector.load %arg7[%c0_21, %c0_22] : memref<8x128xf32, #tpu.memory_space<vmem>>, vector<8x128xf32>
    tpu.vector_store %arg7[%c0_21, %c0_22], %37 {strides = array<i32>} : memref<8x128xf32, #tpu.memory_space<vmem>>, vector<8x128xf32>,
    return
  }
  func.func @transform_0(%arg0: i32) -> (i32, i32) {
    %c0_i32 = arith.constant 0 : i32
    %c0_i32_0 = arith.constant 0 : i32
    %c0_i32_1 = arith.constant 0 : i32
    return %c0_i32, %c0_i32_0 : i32, i32
  }
  func.func @transform_1(%arg0: i32) -> (i32, i32) {
    %c0_i32 = arith.constant 0 : i32
    %c0_i32_0 = arith.constant 0 : i32
    %c0_i32_1 = arith.constant 0 : i32
    return %c0_i32, %c0_i32_0 : i32, i32
  }
  func.func @transform_2(%arg0: i32) -> (i32, i32) {
    %c0_i32 = arith.constant 0 : i32
    %c0_i32_0 = arith.constant 0 : i32
    %c0_i32_1 = arith.constant 0 : i32
    return %c0_i32, %c0_i32_0 : i32, i32
  }
  func.func @transform_3(%arg0: i32) -> (i32, i32) {
    %c0_i32 = arith.constant 0 : i32
    %c0_i32_0 = arith.constant 0 : i32
    %c0_i32_1 = arith.constant 0 : i32
    return %c0_i32, %c0_i32_0 : i32, i32
  }
  func.func @transform_4(%arg0: i32) -> (i32, i32) {
    %c0_i32 = arith.constant 0 : i32
    %c0_i32_0 = arith.constant 0 : i32
    %c0_i32_1 = arith.constant 0 : i32
    return %c0_i32, %c0_i32_0 : i32, i32
  }
  func.func @transform_5(%arg0: i32) -> (i32, i32) {
    %c0_i32 = arith.constant 0 : i32
    %c0_i32_0 = arith.constant 0 : i32
    %c0_i32_1 = arith.constant 0 : i32
    return %c0_i32, %c0_i32_0 : i32, i32
  }
  func.func @transform_6(%arg0: i32) -> (i32, i32) {
    %c0_i32 = arith.constant 0 : i32
    %c0_i32_0 = arith.constant 0 : i32
    %c0_i32_1 = arith.constant 0 : i32
    return %c0_i32, %c0_i32_0 : i32, i32
  }
}

</mosaic_0001>

<llo_original>
// kernel: tpu_custom_call.1
$region0: #{tpu_custom_call.1}
  #allocation0 [shape = 'u32[]', space=smem, size = 0x4, offset = 0x4, fixed_abs, tag = 'smem constant byte address 0x4 - core index']
  #allocation1 [shape = 'u32[72,128]{1,0:T(1,128)}', space=vmem, size = 0x9000, scoped, tag = 'internal scratch']
  %s0 = inlined_call_operand.hbm [shape: bf16[8,128], index: 0, kind: input, shape index: {}]
  %s1 = inlined_call_operand.hbm [shape: bf16[128,128], index: 1, kind: input, shape index: {}]
  %s2 = inlined_call_operand.hbm [shape: bf16[128,128], index: 2, kind: input, shape index: {}]
  %s3 = inlined_call_operand.vmem [shape: f32[1,128], index: 3, kind: input, shape index: {}]
  %s4 = inlined_call_operand.vmem [shape: f32[1,128], index: 4, kind: input, shape index: {}]
  %s5 = inlined_call_operand.hbm [shape: bf16[128,128], index: 5, kind: input, shape index: {}]
  %s6 = inlined_call_operand.hbm [shape: f32[8,128], index: 6, kind: output, shape index: {}]
  %s7 = sld [smem:[#allocation0]]
  $region50: #{tpu_custom_call.1} parent=0
    _
  %s9 = ssub.s32 1, %s7
  %s10 = scalar_select 0, %s9, %s7
  $region1: #{tpu_custom_call.1} parent=0
    #allocation2 [shape = 'u8[2048]{0}', space=vmem, size = 0x800, scoped, tag = 'input window, operand 0, single buffered']
    #allocation3 [shape = 's32[1]{0}', space=sflag, size = 0x4, scoped, tag = 'scoped memory for tpu_custom_call.1']
    #allocation4 [shape = 's32[1]{0}', space=sflag, size = 0x4, scoped, tag = 'scoped memory for tpu_custom_call.1']
    #allocation5 [shape = 'u8[32768]{0}', space=vmem, size = 0x8000, scoped, tag = 'input window, operand 1, single buffered']
    #allocation6 [shape = 's32[1]{0}', space=sflag, size = 0x4, scoped, tag = 'scoped memory for tpu_custom_call.1']
    #allocation7 [shape = 'u8[32768]{0}', space=vmem, size = 0x8000, scoped, tag = 'input window, operand 2, single buffered']
    #allocation8 [shape = 'u8[32768]{0}', space=vmem, size = 0x8000, scoped, tag = 'input window, operand 5, single buffered']
    #allocation9 [shape = 's32[1]{0}', space=sflag, size = 0x4, scoped, tag = 'scoped memory for tpu_custom_call.1']
    #allocation10 [shape = 'u8[4096]{0}', space=vmem, size = 0x1000, scoped, tag = 'output window, operand 0, single buffered']
    %11 = vsyncpa [#allocation3], 0
    %12 = vsyncpa [#allocation6], 0
    %13 = vsyncpa [#allocation9], 0
    %14 = vsyncpa [#allocation4], 0
    // Predicated region
    $region2: #{tpu_custom_call.1} parent=1 // pred_check
      _
    $region3: #{tpu_custom_call.1} parent=1 // pred_check_branch
      %16 = sbr.rel (0) target = $region5
    $region4: #{tpu_custom_call.1} parent=1 // pred_region
      %18 = vsyncadd [#allocation3], 0
      %s20 = sshll.u32 %s0, 4
      %s21 = int_to_ptr.hbm [resolvable:$true] %s20
      %s22 = sshll.u32 [#allocation2], 4
      %s23 = int_to_ptr.vmem [resolvable:$true] %s22
      %25 = dma.hbm_to_vmem [thread:$0]  %s21, 64, %s23, [#allocation3]
    $region5: #{tpu_custom_call.1} parent=1 // pred_fallthru
      _
    // Predicated region
    $region6: #{tpu_custom_call.1} parent=1 // pred_check
      _
    $region7: #{tpu_custom_call.1} parent=1 // pred_check_branch
      %27 = sbr.rel (0) target = $region9
    $region8: #{tpu_custom_call.1} parent=1 // pred_region
      %29 = vsyncadd [#allocation6], 0
      %s30 = sshll.u32 %s1, 4
      %s31 = int_to_ptr.hbm [resolvable:$true] %s30
      %s32 = sshll.u32 [#allocation5], 4
      %s33 = int_to_ptr.vmem [resolvable:$true] %s32
      %38 = dma.hbm_to_vmem [thread:$0]  %s31, 1024, %s33, [#allocation6], 64, 64, 4
    $region9: #{tpu_custom_call.1} parent=1 // pred_fallthru
      _
    // Predicated region
    $region10: #{tpu_custom_call.1} parent=1 // pred_check
      _
    $region11: #{tpu_custom_call.1} parent=1 // pred_check_branch
      %40 = sbr.rel (0) target = $region13
    $region12: #{tpu_custom_call.1} parent=1 // pred_region
      %42 = vsyncadd [#allocation6], 0
      %s43 = sshll.u32 %s2, 4
      %s44 = int_to_ptr.hbm [resolvable:$true] %s43
      %s45 = sshll.u32 [#allocation7], 4
      %s46 = int_to_ptr.vmem [resolvable:$true] %s45
      %51 = dma.hbm_to_vmem [thread:$0]  %s44, 1024, %s46, [#allocation6], 64, 64, 4
    $region13: #{tpu_custom_call.1} parent=1 // pred_fallthru
      _
    // Predicated region
    $region14: #{tpu_custom_call.1} parent=1 // pred_check
      _
    $region15: #{tpu_custom_call.1} parent=1 // pred_check_branch
      %53 = sbr.rel (0) target = $region17
    $region16: #{tpu_custom_call.1} parent=1 // pred_region
      _
    $region17: #{tpu_custom_call.1} parent=1 // pred_fallthru
      _
    // Predicated region
    $region18: #{tpu_custom_call.1} parent=1 // pred_check
      _
    $region19: #{tpu_custom_call.1} parent=1 // pred_check_branch
      %55 = sbr.rel (0) target = $region21
    $region20: #{tpu_custom_call.1} parent=1 // pred_region
      _
    $region21: #{tpu_custom_call.1} parent=1 // pred_fallthru
      _
    // Predicated region
    $region22: #{tpu_custom_call.1} parent=1 // pred_check
      _
    $region23: #{tpu_custom_call.1} parent=1 // pred_check_branch
      %57 = sbr.rel (0) target = $region25
    $region24: #{tpu_custom_call.1} parent=1 // pred_region
      %59 = vsyncadd [#allocation9], 0
      %s60 = sshll.u32 %s5, 4
      %s61 = int_to_ptr.hbm [resolvable:$true] %s60
      %s62 = sshll.u32 [#allocation8], 4
      %s63 = int_to_ptr.vmem [resolvable:$true] %s62
      %68 = dma.hbm_to_vmem [thread:$0]  %s61, 1024, %s63, [#allocation9], 64, 64, 4
    $region25: #{tpu_custom_call.1} parent=1 // pred_fallthru
      _
    // Predicated region
    $region26: #{tpu_custom_call.1} parent=1 // pred_check
      _
    $region27: #{tpu_custom_call.1} parent=1 // pred_check_branch
      %70 = sbr.rel (0) target = $region29
    $region28: #{tpu_custom_call.1} parent=1 // pred_region
      %72 = dma.done [#allocation3], 64
    $region29: #{tpu_custom_call.1} parent=1 // pred_fallthru
      _
    // Predicated region
    $region30: #{tpu_custom_call.1} parent=1 // pred_check
      _
    $region31: #{tpu_custom_call.1} parent=1 // pred_check_branch
      %74 = sbr.rel (0) target = $region33
    $region32: #{tpu_custom_call.1} parent=1 // pred_region
      %76 = dma.done [#allocation6], 1024
    $region33: #{tpu_custom_call.1} parent=1 // pred_fallthru
      _
    // Predicated region
    $region34: #{tpu_custom_call.1} parent=1 // pred_check
      _
    $region35: #{tpu_custom_call.1} parent=1 // pred_check_branch
      %78 = sbr.rel (0) target = $region37
    $region36: #{tpu_custom_call.1} parent=1 // pred_region
      %80 = dma.done [#allocation6], 1024
    $region37: #{tpu_custom_call.1} parent=1 // pred_fallthru
      _
    // Predicated region
    $region38: #{tpu_custom_call.1} parent=1 // pred_check
      _
    $region39: #{tpu_custom_call.1} parent=1 // pred_check_branch
      %82 = sbr.rel (0) target = $region41
    $region40: #{tpu_custom_call.1} parent=1 // pred_region
      %84 = dma.done [#allocation9], 1024
    $region41: #{tpu_custom_call.1} parent=1 // pred_fallthru
      _
    %v85 = vld [vmem:[#allocation2] sm:$0xf]
    %v86 = vld [vmem:[#allocation5] sm:$0xf]
    %v87 = vld [vmem:[#allocation5 + $0x4] sm:$0xf]
    %v88 = vld [vmem:[#allocation5 + $0x8] sm:$0xf]
    %v89 = vld [vmem:[#allocation5 + $0xc] sm:$0xf]
    %v90 = vld [vmem:[#allocation5 + $0x10] sm:$0xf]
    %v91 = vld [vmem:[#allocation5 + $0x14] sm:$0xf]
    %v92 = vld [vmem:[#allocation5 + $0x18] sm:$0xf]
    %v93 = vld [vmem:[#allocation5 + $0x1c] sm:$0xf]
    %v94 = vld [vmem:[#allocation5 + $0x20] sm:$0xf]
    %v95 = vld [vmem:[#allocation5 + $0x24] sm:$0xf]
    %v96 = vld [vmem:[#allocation5 + $0x28] sm:$0xf]
    %v97 = vld [vmem:[#allocation5 + $0x2c] sm:$0xf]
    %v98 = vld [vmem:[#allocation5 + $0x30] sm:$0xf]
    %v99 = vld [vmem:[#allocation5 + $0x34] sm:$0xf]
    %v100 = vld [vmem:[#allocation5 + $0x38] sm:$0xf]
    %v101 = vld [vmem:[#allocation5 + $0x3c] sm:$0xf]
    %v118 = vunpack.c.l.b16 %v86
    %v119 = vunpack.c.l.b16 %v87
    %v120 = vunpack.c.l.b16 %v88
    %v121 = vunpack.c.l.b16 %v89
    %v122 = vunpack.c.l.b16 %v90
    %v123 = vunpack.c.l.b16 %v91
    %v124 = vunpack.c.l.b16 %v92
    %v125 = vunpack.c.l.b16 %v93
    %v126 = vunpack.c.l.b16 %v94
    %v127 = vunpack.c.l.b16 %v95
    %v128 = vunpack.c.l.b16 %v96
    %v129 = vunpack.c.l.b16 %v97
    %v130 = vunpack.c.l.b16 %v98
    %v131 = vunpack.c.l.b16 %v99
    %v132 = vunpack.c.l.b16 %v100
    %v133 = vunpack.c.l.b16 %v101
    %v134 = vpack.c.b16 %v119, %v118
    %v135 = vpack.c.b16 %v121, %v120
    %v136 = vpack.c.b16 %v123, %v122
    %v137 = vpack.c.b16 %v125, %v124
    %v138 = vpack.c.b16 %v127, %v126
    %v139 = vpack.c.b16 %v129, %v128
    %v140 = vpack.c.b16 %v131, %v130
    %v141 = vpack.c.b16 %v133, %v132
    %150 = vmatpush.bf16.msra.mxu0 %v141
    %151 = vmatpush.bf16.msra.mxu0 %v140
    %152 = vmatpush.bf16.msra.mxu0 %v139
    %153 = vmatpush.bf16.msra.mxu0 %v138
    %154 = vmatpush.bf16.msra.mxu0 %v137
    %155 = vmatpush.bf16.msra.mxu0 %v136
    %156 = vmatpush.bf16.msra.mxu0 %v135
    %157 = vmatpush.bf16.msra.mxu0 %v134
    %158 = vmatmul.bf16.gmra.mxu0 %v85
    %v159 = vpop.f32.mrf.mxu0
    %v160 = vadd.f32 0.0, %v159
    %v161 = vpop.f32.mrf.mxu0
    %162 = vdwg.mxu0
    %v163 = vmax.f32 %v160, 0.0
    %v164 = vpack.c.bf16 %v163, %v163
    %v165 = vld [vmem:[#allocation7] sm:$0xf]
    %v166 = vld [vmem:[#allocation7 + $0x4] sm:$0xf]
    %v167 = vld [vmem:[#allocation7 + $0x8] sm:$0xf]
    %v168 = vld [vmem:[#allocation7 + $0xc] sm:$0xf]
    %v169 = vld [vmem:[#allocation7 + $0x10] sm:$0xf]
    %v170 = vld [vmem:[#allocation7 + $0x14] sm:$0xf]
    %v171 = vld [vmem:[#allocation7 + $0x18] sm:$0xf]
    %v172 = vld [vmem:[#allocation7 + $0x1c] sm:$0xf]
    %v173 = vld [vmem:[#allocation7 + $0x20] sm:$0xf]
    %v174 = vld [vmem:[#allocation7 + $0x24] sm:$0xf]
    %v175 = vld [vmem:[#allocation7 + $0x28] sm:$0xf]
    %v176 = vld [vmem:[#allocation7 + $0x2c] sm:$0xf]
    %v177 = vld [vmem:[#allocation7 + $0x30] sm:$0xf]
    %v178 = vld [vmem:[#allocation7 + $0x34] sm:$0xf]
    %v179 = vld [vmem:[#allocation7 + $0x38] sm:$0xf]
    %v180 = vld [vmem:[#allocation7 + $0x3c] sm:$0xf]
    %v197 = vunpack.c.l.b16 %v165
    %v198 = vunpack.c.l.b16 %v166
    %v199 = vunpack.c.l.b16 %v167
    %v200 = vunpack.c.l.b16 %v168
    %v201 = vunpack.c.l.b16 %v169
    %v202 = vunpack.c.l.b16 %v170
    %v203 = vunpack.c.l.b16 %v171
    %v204 = vunpack.c.l.b16 %v172
    %v205 = vunpack.c.l.b16 %v173
    %v206 = vunpack.c.l.b16 %v174
    %v207 = vunpack.c.l.b16 %v175
    %v208 = vunpack.c.l.b16 %v176
    %v209 = vunpack.c.l.b16 %v177
    %v210 = vunpack.c.l.b16 %v178
    %v211 = vunpack.c.l.b16 %v179
    %v212 = vunpack.c.l.b16 %v180
    %v213 = vpack.c.b16 %v198, %v197
    %v214 = vpack.c.b16 %v200, %v199
    %v215 = vpack.c.b16 %v202, %v201
    %v216 = vpack.c.b16 %v204, %v203
    %v217 = vpack.c.b16 %v206, %v205
    %v218 = vpack.c.b16 %v208, %v207
    %v219 = vpack.c.b16 %v210, %v209
    %v220 = vpack.c.b16 %v212, %v211
    %229 = vmatpush.bf16.msra.mxu0 %v220
    %230 = vmatpush.bf16.msra.mxu0 %v219
    %231 = vmatpush.bf16.msra.mxu0 %v218
    %232 = vmatpush.bf16.msra.mxu0 %v217
    %233 = vmatpush.bf16.msra.mxu0 %v216
    %234 = vmatpush.bf16.msra.mxu0 %v215
    %235 = vmatpush.bf16.msra.mxu0 %v214
    %236 = vmatpush.bf16.msra.mxu0 %v213
    %237 = vmatmul.bf16.gmra.mxu0 %v164
    %v238 = vpop.f32.mrf.mxu0
    %v239 = vadd.f32 0.0, %v238
    %v240 = vpop.f32.mrf.mxu0
    %241 = vdwg.mxu0
    %v242 = vmax.f32 %v239, 0.0
    %v243 = vrot.slane %v242, 4
    %v244 = vadd.f32 %v242, %v243
    %v245 = vrot.slane %v244, 2
    %v246 = vadd.f32 %v244, %v245
    %v247 = vrot.slane %v246, 1
    %v248 = vadd.f32 %v246, %v247
    %v249 = vmul.f32 %v248, 0.125
    %v250 = vmul.f32 %v242, %v242
    %v251 = vrot.slane %v250, 4
    %v252 = vadd.f32 %v250, %v251
    %v253 = vrot.slane %v252, 2
    %v254 = vadd.f32 %v252, %v253
    %v255 = vrot.slane %v254, 1
    %v256 = vadd.f32 %v254, %v255
    %v257 = vmul.f32 %v256, 0.125
    %v258 = vmul.f32 %v249, %v249
    %v259 = vsub.f32 %v257, %v258
    %v260 = vmax.f32 %v259, 0.0
    %v261 = vld [vmem:[%s3] sm:$0x1]
    %v262 = vadd.f32 %v260, 1e-05
    %v263 = vrsqrt.pop %v262
    %v264 = vmul.f32 %v263, %v262
    %v265 = vmul.f32 %v264, %v263
    %v266 = vmul.f32 0.5, %v265
    %v267 = vsub.f32 1.5, %v266
    %v268 = vmul.f32 %v263, %v267
    %vm269 = vweird.f32 %v262
    %vm270 = vweird.f32 %v263
    %vm271 = vmor %vm269, %vm270
    %v272 = vsel %vm271, %v263, %v268
    %v273 = vmul.f32 %v261, %v272
    %v274 = vld [vmem:[%s4] sm:$0x1]
    %v275 = vmul.f32 %v249, %v273
    %v276 = vsub.f32 %v274, %v275
    %v278 = vperm.slane %v273, 0
    %v280 = vmul.f32 %v242, %v278
    %v282 = vperm.slane %v276, 0
    %v284 = vadd.f32 %v280, %v282
    %v285 = vpack.c.bf16 %v284, %v284
    %v286 = vld [vmem:[#allocation8] sm:$0xf]
    %v287 = vld [vmem:[#allocation8 + $0x4] sm:$0xf]
    %v288 = vld [vmem:[#allocation8 + $0x8] sm:$0xf]
    %v289 = vld [vmem:[#allocation8 + $0xc] sm:$0xf]
    %v290 = vld [vmem:[#allocation8 + $0x10] sm:$0xf]
    %v291 = vld [vmem:[#allocation8 + $0x14] sm:$0xf]
    %v292 = vld [vmem:[#allocation8 + $0x18] sm:$0xf]
    %v293 = vld [vmem:[#allocation8 + $0x1c] sm:$0xf]
    %v294 = vld [vmem:[#allocation8 + $0x20] sm:$0xf]
    %v295 = vld [vmem:[#allocation8 + $0x24] sm:$0xf]
    %v296 = vld [vmem:[#allocation8 + $0x28] sm:$0xf]
    %v297 = vld [vmem:[#allocation8 + $0x2c] sm:$0xf]
    %v298 = vld [vmem:[#allocation8 + $0x30] sm:$0xf]
    %v299 = vld [vmem:[#allocation8 + $0x34] sm:$0xf]
    %v300 = vld [vmem:[#allocation8 + $0x38] sm:$0xf]
    %v301 = vld [vmem:[#allocation8 + $0x3c] sm:$0xf]
    %v318 = vunpack.c.l.b16 %v286
    %v319 = vunpack.c.l.b16 %v287
    %v320 = vunpack.c.l.b16 %v288
    %v321 = vunpack.c.l.b16 %v289
    %v322 = vunpack.c.l.b16 %v290
    %v323 = vunpack.c.l.b16 %v291
    %v324 = vunpack.c.l.b16 %v292
    %v325 = vunpack.c.l.b16 %v293
    %v326 = vunpack.c.l.b16 %v294
    %v327 = vunpack.c.l.b16 %v295
    %v328 = vunpack.c.l.b16 %v296
    %v329 = vunpack.c.l.b16 %v297
    %v330 = vunpack.c.l.b16 %v298
    %v331 = vunpack.c.l.b16 %v299
    %v332 = vunpack.c.l.b16 %v300
    %v333 = vunpack.c.l.b16 %v301
    %v334 = vpack.c.b16 %v319, %v318
    %v335 = vpack.c.b16 %v321, %v320
    %v336 = vpack.c.b16 %v323, %v322
    %v337 = vpack.c.b16 %v325, %v324
    %v338 = vpack.c.b16 %v327, %v326
    %v339 = vpack.c.b16 %v329, %v328
    %v340 = vpack.c.b16 %v331, %v330
    %v341 = vpack.c.b16 %v333, %v332
    %350 = vmatpush.bf16.msra.mxu0 %v341
    %351 = vmatpush.bf16.msra.mxu0 %v340
    %352 = vmatpush.bf16.msra.mxu0 %v339
    %353 = vmatpush.bf16.msra.mxu0 %v338
    %354 = vmatpush.bf16.msra.mxu0 %v337
    %355 = vmatpush.bf16.msra.mxu0 %v336
    %356 = vmatpush.bf16.msra.mxu0 %v335
    %357 = vmatpush.bf16.msra.mxu0 %v334
    %358 = vmatmul.bf16.gmra.mxu0 %v285
    %v359 = vpop.f32.mrf.mxu0
    %v360 = vadd.f32 0.0, %v359
    %v361 = vpop.f32.mrf.mxu0
    %362 = vdwg.mxu0
    %363 = vst [vmem:[#allocation10] sm:$0xff] %v360
    // Predicated region
    $region42: #{tpu_custom_call.1} parent=1 // pred_check
      _
    $region43: #{tpu_custom_call.1} parent=1 // pred_check_branch
      %365 = sbr.rel (0) target = $region45
    $region44: #{tpu_custom_call.1} parent=1 // pred_region
      %367 = vsyncadd [#allocation4], 0
      %s369 = sshll.u32 [#allocation10], 4
      %s370 = int_to_ptr.vmem [resolvable:$true] %s369
      %s371 = sshll.u32 %s6, 4
      %s372 = int_to_ptr.hbm [resolvable:$true] %s371
      %374 = dma.vmem_to_hbm [thread:$0]  %s370, 128, %s372, [#allocation4]
    $region45: #{tpu_custom_call.1} parent=1 // pred_fallthru
      _
    // Predicated region
    $region46: #{tpu_custom_call.1} parent=1 // pred_check
      _
    $region47: #{tpu_custom_call.1} parent=1 // pred_check_branch
      %376 = sbr.rel (0) target = $region49
    $region48: #{tpu_custom_call.1} parent=1 // pred_region
      %378 = dma.done [#allocation4], 128
    $region49: #{tpu_custom_call.1} parent=1 // pred_fallthru
      _
    %379 = vsyncpa [#allocation3], 1
    %380 = vsyncpa [#allocation6], 1
    %381 = vsyncpa [#allocation9], 1
    %382 = vsyncpa [#allocation4], 1

</llo_original>
